<compile_context>
chip_gen: v6e
topology: v6e:2x2x1
jax: 0.10.0
libtpu: 0.0.40
codegen_flags: <defaults>
</compile_context>

<pallas_src>
import jax
import jax.numpy as jnp
from jax.experimental import pallas as pl
from jax.experimental.pallas import tpu as pltpu


_MIN_PALLAS_ELEMS = 64 * 1024          # below this, fused XLA elementwise wins
_TARGET_TILE_BYTES = 8 * 1024 * 1024   # ~8 MiB block: per-step overhead <5% on v7x
_VMEM_LIMIT_BYTES = 40 << 20           # 2 bufs x (in+out) x 8 MiB = 32 MiB + headroom;
                                       # < 64 MiB physical (v7x), << 128 MiB (v5e/v6e)
_MAX_COLS = 8192                       # lane-dense width cap


def _relu_kernel(x_ref, o_ref):
    # Elementwise ReLU on the current VMEM tile (pure VPU op, hidden under DMA).
    o_ref[...] = jnp.maximum(x_ref[...], jnp.zeros((), x_ref.dtype))


def _round_up(x: int, m: int) -> int:
    return ((x + m - 1) // m) * m


def tudui_forward(x: jax.Array, *,
                  min_pallas_elems: int = _MIN_PALLAS_ELEMS,
                  donate_input: bool = False) -> jax.Array:
    """ReLU forward identical to nn.ReLU()(x); preserves shape and dtype."""
    total = x.size

    # Fast path: tiny inputs, or totals that can't be flattened lane-dense.
    if total < min_pallas_elems or total % 128 != 0:
        return jnp.maximum(x, jnp.zeros((), x.dtype))

    # Lane-dense flattening: cols = largest power-of-two multiple of 128 that
    # divides the total, capped at _MAX_COLS.
    cols = 128
    while total % (cols * 2) == 0 and cols * 2 <= _MAX_COLS:
        cols *= 2
    rows = total // cols

    itemsize = jnp.dtype(x.dtype).itemsize
    sub = max(8, 32 // itemsize)  # sublane packing: 8 f32, 16 bf16, 32 int8/fp8

    # Target row tile from the ~8 MiB block budget, sublane-aligned.
    row_bytes = cols * itemsize
    tile_r_target = max(sub, (_TARGET_TILE_BYTES // row_bytes) // sub * sub)

    if rows < 2 * sub:
        # Too small to split into two sublane-aligned blocks: one full-array
        # block (always a legal block shape regardless of divisibility).
        tile_r = rows
        grid_len = 1
    else:
        # Even (>=2) number of blocks so v7x's 2 TensorCores stay balanced.
        n_blocks = max(2, pl.cdiv(rows, tile_r_target))
        n_blocks += n_blocks % 2
        tile_r = _round_up(pl.cdiv(rows, n_blocks), sub)
        grid_len = pl.cdiv(rows, tile_r)
        for _ in range(4):  # keep the realized grid length even (bounded fixup)
            if grid_len % 2 == 0:
                break
            n_blocks = grid_len + (grid_len % 2)
            tile_r = _round_up(pl.cdiv(rows, n_blocks), sub)
            grid_len = pl.cdiv(rows, tile_r)
        # Snap to an exact divisor of rows (same block count) when possible so
        # the last step is a full block -> unmasked full-width stores.
        if rows % grid_len == 0 and (rows // grid_len) % sub == 0:
            tile_r = rows // grid_len

    x2d = x.reshape(rows, cols)

    out2d = pl.pallas_call(
        _relu_kernel,
        out_shape=jax.ShapeDtypeStruct((rows, cols), x.dtype),
        grid_spec=pltpu.PrefetchScalarGridSpec(
            num_scalar_prefetch=0,
            grid=(grid_len,),
            in_specs=[pl.BlockSpec((tile_r, cols), lambda i: (i, 0))],
            out_specs=pl.BlockSpec((tile_r, cols), lambda i: (i, 0)),
        ),
        compiler_params=pltpu.CompilerParams(
            dimension_semantics=("parallel",),
            vmem_limit_bytes=_VMEM_LIMIT_BYTES,
        ),
        cost_estimate=pl.CostEstimate(
            flops=total,
            transcendentals=0,
            bytes_accessed=2 * total * itemsize,
        ),
        input_output_aliases=({0: 0} if donate_input else {}),
    )(x2d)

    return out2d.reshape(x.shape)


if __name__ == "__main__":
    key = jax.random.PRNGKey(0)

    # Small NCHW input consistent with the module's usage (it reshapes to
    # (-1, 1, 2, 2) NCHW before applying ReLU).
    B, C, H, W = 2, 4, 16, 16
    x_small = jax.random.normal(key, (B, C, H, W), dtype=jnp.float32)
    ref_small = jnp.maximum(x_small, 0.0)

    # 1) Force the Pallas kernel on the small shape (single full block).
    y_small_kernel = jax.block_until_ready(tudui_forward(x_small, min_pallas_elems=0))
    assert y_small_kernel.shape == x_small.shape and y_small_kernel.dtype == x_small.dtype
    assert jnp.allclose(y_small_kernel, ref_small), "kernel mismatch vs reference ReLU"

    # 2) Default path for the tiny input uses the jnp.maximum fast path.
    y_small_default = jax.block_until_ready(tudui_forward(x_small))
    assert jnp.allclose(y_small_default, ref_small)

    # 3) Larger NCHW input (~8 MiB f32): exercises the even, multi-step row
    #    grid (grid=(2,)) with software-pipelined DMA and exact block split.
    x_big = jax.random.normal(jax.random.PRNGKey(0), (8, 16, 128, 128), dtype=jnp.float32)
    y_big = jax.block_until_ready(tudui_forward(x_big))
    assert jnp.allclose(y_big, jnp.maximum(x_big, 0.0)), "tiled kernel mismatch"

    # 4) Non-power-of-two total: exercises the partial final block path.
    x_odd = jax.random.normal(jax.random.PRNGKey(0), (3, 4, 56, 128), dtype=jnp.float32)
    y_odd = jax.block_until_ready(tudui_forward(x_odd))
    assert jnp.allclose(y_odd, jnp.maximum(x_odd, 0.0)), "partial-block kernel mismatch"

    # 5) Exact tiny example from the original script:
    #    input = [[1, -0.5], [-1, 3]] reshaped to (-1, 1, 2, 2).
    small = jnp.array([[1.0, -0.5], [-1.0, 3.0]], dtype=jnp.float32).reshape(-1, 1, 2, 2)
    y_tiny = jax.block_until_ready(tudui_forward(small))
    assert jnp.allclose(y_tiny, jnp.maximum(small, 0.0))

    print("KERNEL_OK")
</pallas_src>

<mosaic_0001>
module attributes {stable_mosaic.version = 11 : i64} {
  func.func @_relu_kernel(%arg0: i32, %arg1: memref<1x2048xf32, #tpu.memory_space<vmem>>, %arg2: memref<1x2048xf32, #tpu.memory_space<vmem>>) attributes {dimension_semantics = [#tpu.dimension_semantics<parallel>], iteration_bounds = array<i64: 1>, scalar_prefetch = 0 : i64, scratch_operands = 0 : i64, tpu.core_type = #tpu.core_type<tc>, window_params = [{transform_indices = @transform_0, window_bounds = array<i64: 1, 2048>}, {transform_indices = @transform_1, window_bounds = array<i64: 1, 2048>}]} {
    %c0 = arith.constant 0 : index
    %c0_0 = arith.constant 0 : index
    %0 = vector.load %arg1[%c0, %c0_0] : memref<1x2048xf32, #tpu.memory_space<vmem>>, vector<1x2048xf32>
    %cst = arith.constant 0.000000e+00 : f32
    %1 = vector.broadcast %cst : f32 to vector<1x2048xf32>
    %2 = arith.maximumf %0, %1 : vector<1x2048xf32>
    %c0_1 = arith.constant 0 : index
    %c0_2 = arith.constant 0 : index
    %3 = vector.load %arg2[%c0_1, %c0_2] : memref<1x2048xf32, #tpu.memory_space<vmem>>, vector<1x2048xf32>
    tpu.vector_store %arg2[%c0_1, %c0_2], %2 {strides = array<i32>} : memref<1x2048xf32, #tpu.memory_space<vmem>>, vector<1x2048xf32>,
    return
  }
  func.func @transform_0(%arg0: i32) -> (i32, i32) {
    %c0_i32 = arith.constant 0 : i32
    %c0_i32_0 = arith.constant 0 : i32
    return %arg0, %c0_i32 : i32, i32
  }
  func.func @transform_1(%arg0: i32) -> (i32, i32) {
    %c0_i32 = arith.constant 0 : i32
    %c0_i32_0 = arith.constant 0 : i32
    return %arg0, %c0_i32 : i32, i32
  }
}

</mosaic_0001>

<llo_original>
// kernel: tpu_custom_call.1
$region0: #{tpu_custom_call.1}
  #allocation0 [shape = 'u32[]', space=smem, size = 0x4, offset = 0x4, fixed_abs, tag = 'smem constant byte address 0x4 - core index']
  #allocation1 [shape = 'u32[144,128]{1,0:T(1,128)}', space=vmem, size = 0x12000, scoped, tag = 'internal scratch']
  %s0 = inlined_call_operand.hbm [shape: f32[1,2048], index: 0, kind: input, shape index: {}]
  %s1 = inlined_call_operand.hbm [shape: f32[1,2048], index: 1, kind: output, shape index: {}]
  %s2 = sld [smem:[#allocation0]]
  $region18: #{tpu_custom_call.1} parent=0
    _
  %s4 = ssub.s32 1, %s2
  %s5 = scalar_select 0, %s4, %s2
  $region1: #{tpu_custom_call.1} parent=0
    #allocation2 [shape = 'u8[8192]{0}', space=vmem, size = 0x2000, scoped, tag = 'input window, operand 0, single buffered']
    #allocation3 [shape = 's32[1]{0}', space=sflag, size = 0x4, scoped, tag = 'scoped memory for tpu_custom_call.1']
    #allocation4 [shape = 's32[1]{0}', space=sflag, size = 0x4, scoped, tag = 'scoped memory for tpu_custom_call.1']
    #allocation5 [shape = 'u8[8192]{0}', space=vmem, size = 0x2000, scoped, tag = 'output window, operand 0, single buffered']
    %6 = vsyncpa [#allocation3], 0
    %7 = vsyncpa [#allocation4], 0
    // Predicated region
    $region2: #{tpu_custom_call.1} parent=1 // pred_check
      _
    $region3: #{tpu_custom_call.1} parent=1 // pred_check_branch
      %9 = sbr.rel (0) target = $region5
    $region4: #{tpu_custom_call.1} parent=1 // pred_region
      %s11 = ssub.s32 256, 256
      %12 = vsyncadd [#allocation3], %s11
      %s14 = sshll.u32 [#allocation2], 4
      %s15 = int_to_ptr.vmem [resolvable:$true] %s14
      %17 = dma.hbm_to_vmem [thread:$0]  %s0, 256, %s15, [#allocation3]
    $region5: #{tpu_custom_call.1} parent=1 // pred_fallthru
      _
    // Predicated region
    $region6: #{tpu_custom_call.1} parent=1 // pred_check
      _
    $region7: #{tpu_custom_call.1} parent=1 // pred_check_branch
      %19 = sbr.rel (0) target = $region9
    $region8: #{tpu_custom_call.1} parent=1 // pred_region
      %20 = dma.done [#allocation3], 256
    $region9: #{tpu_custom_call.1} parent=1 // pred_fallthru
      _
    %v21 = vld [vmem:[#allocation2] sm:$0xff]
    %v22 = vld [vmem:[#allocation2 + $0x8] sm:$0xff]
    %v23 = vmax.f32 %v21, 0.0
    %v24 = vmax.f32 %v22, 0.0
    %25 = vst [vmem:[#allocation5] sm:$0xff] %v23
    %26 = vst [vmem:[#allocation5 + $0x8] sm:$0xff] %v24
    // Predicated region
    $region10: #{tpu_custom_call.1} parent=1 // pred_check
      _
    $region11: #{tpu_custom_call.1} parent=1 // pred_check_branch
      %28 = sbr.rel (0) target = $region13
    $region12: #{tpu_custom_call.1} parent=1 // pred_region
      %s30 = ssub.s32 256, 256
      %31 = vsyncadd [#allocation4], %s30
      %s33 = sshll.u32 [#allocation5], 4
      %s34 = int_to_ptr.vmem [resolvable:$true] %s33
      %36 = dma.vmem_to_hbm [thread:$0]  %s34, 256, %s1, [#allocation4]
    $region13: #{tpu_custom_call.1} parent=1 // pred_fallthru
      _
    // Predicated region
    $region14: #{tpu_custom_call.1} parent=1 // pred_check
      _
    $region15: #{tpu_custom_call.1} parent=1 // pred_check_branch
      %38 = sbr.rel (0) target = $region17
    $region16: #{tpu_custom_call.1} parent=1 // pred_region
      %39 = dma.done [#allocation4], 256
    $region17: #{tpu_custom_call.1} parent=1 // pred_fallthru
      _
    %40 = vsyncpa [#allocation3], 1
    %41 = vsyncpa [#allocation4], 1

</llo_original>
